<compile_context>
chip_gen: v6e
topology: v6e:2x2x1
jax: 0.10.0
libtpu: 0.0.40
codegen_flags: <defaults>
</compile_context>

<pallas_src>
from functools import partial

import jax
import jax.numpy as jnp
from jax import lax
from jax.experimental import pallas as pl
from jax.experimental.pallas import tpu as pltpu

VAR_EPS = 1e-4   # Encoder var_eps default
BN_EPS = 1e-3    # nn.BatchNorm1d(eps=0.001)


def _round_up(n, m):
    return ((n + m - 1) // m) * m


def _encoder_kernel(x_ref,                 # (tb, n_input)      f32  (cast in-kernel)
                    w1_ref, b1_ref,        # (n_input, H) bf16, (1, H) f32   (BN folded)
                    wh_ref, bh_ref,        # (H, out_w)  bf16,  (1, out_w) f32
                    eps_ref,               # (tb, out_w) bf16   (noise in the z lanes)
                    out_ref,               # (tb, out_w) f32  = [q_m | q_v | z | 0-pad]
                    *, n_out):
    # --- FCLayers layer 0: Linear + folded eval-mode BatchNorm + ReLU ---
    # TODO(synk): Dropout(p=0.1) is identity in eval mode; training-mode dropout omitted.
    h = jnp.dot(x_ref[...].astype(jnp.bfloat16), w1_ref[...],
                preferred_element_type=jnp.float32)
    h = jnp.maximum(h + b1_ref[...], 0.0)

    # --- fused mean/var heads: one lane-full MXU push, layout [q_m | qv_logit | q_m | 0] ---
    head = jnp.dot(h.astype(jnp.bfloat16), wh_ref[...],
                   preferred_element_type=jnp.float32) + bh_ref[...]

    lane = lax.broadcasted_iota(jnp.int32, head.shape, 1)
    is_var = (lane >= n_out) & (lane < 2 * n_out)
    is_z = (lane >= 2 * n_out) & (lane < 3 * n_out)

    # Full-vreg exp / sqrt (EUP); only the var lanes are meaningful, the rest is
    # free filler and gets masked away below.
    q_v = jnp.exp(head) + VAR_EPS
    sd = jnp.sqrt(q_v)
    # Move sqrt(q_v) from the var lanes into the z lanes (static shift by n_out).
    sd_z = jnp.roll(sd, n_out, axis=-1)

    out = jnp.where(is_var, q_v, head)                         # q_m / pad lanes keep head
    out = jnp.where(is_z, head + sd_z * eps_ref[...].astype(jnp.float32), out)
    out_ref[...] = out                                         # single unmasked lane-dense store


def _fold_params(params, out_w):
    """Fold eval-mode BatchNorm into W1/b1 (exact) and pack the heads lane-full."""
    n_out = params["wm"].shape[1]
    scale = params["gamma"] * lax.rsqrt(params["rvar"] + BN_EPS)                 # [1, H]
    w1f = (params["w1"] * scale).astype(jnp.bfloat16)                            # [In, H]
    b1f = (params["b1"] - params["rmean"]) * scale + params["beta"]              # [1, H] f32
    zpad_w = jnp.zeros((params["wm"].shape[0], out_w - 3 * n_out), params["wm"].dtype)
    zpad_b = jnp.zeros((1, out_w - 3 * n_out), jnp.float32)
    # Lane layout [ Wm | Wv | Wm | 0 ]: pad lanes of head become exact zeros for free.
    whf = jnp.concatenate([params["wm"], params["wv"], params["wm"], zpad_w],
                          axis=1).astype(jnp.bfloat16)                           # [H, out_w]
    bhf = jnp.concatenate([params["bm"], params["bv"], params["bm"], zpad_b], axis=1)
    return w1f, b1f, whf, bhf


def _pick_tb(B, n_input, block_rows=None):
    """Row-tile size: big tiles (v5e/v6e), grid >= 2 (v7x), divisor of B if possible."""
    if B <= 8:
        return B
    if block_rows is None:
        # VMEM-conscious row budget (~4 MiB of double-buffered streamed tiles).
        bytes_per_row = n_input * 4 + 128 * 4 + 128 * 2            # x + out + eps
        tb = (4 << 20) // (2 * bytes_per_row)
        tb = min(512, tb)                                          # fat tiles on 1-TC chips
        tb = min(tb, (B + 1) // 2)                                 # keep grid >= 2 for v7x
    else:
        tb = block_rows
    tb = max(8, min(tb, B))
    tb -= tb % 8
    tb = max(8, tb)
    if B % tb:
        # Prefer a multiple-of-8 divisor of B so the wrapper never pads/copies x.
        for cand in range(tb, 7, -8):
            if B % cand == 0:
                return cand
        # Otherwise minimize padded rows for the chosen number of grid steps.
        steps = -(-B // tb)
        tb = _round_up(-(-B // steps), 8)
    return tb


@partial(jax.jit, static_argnames=("block_rows",))
def encoder_forward(x, params, eps, *, block_rows=None):
    """Fused Encoder forward: returns (q_m, q_v, latent), each [B, n_output] f32.

    `eps` is the caller-supplied standard-normal noise [B, n_output] used for the
    reparameterized sample (replaces Normal(q_m, sqrt(q_v)).rsample()).
    """
    B, n_input = x.shape
    n_hidden = params["w1"].shape[1]
    n_output = params["wm"].shape[1]
    out_w = max(128, _round_up(3 * n_output, 128))     # unmasked 128-lane stores

    w1f, b1f, whf, bhf = _fold_params(params, out_w)

    tb = _pick_tb(B, n_input, block_rows)
    bp = _round_up(B, tb)
    if bp != B:
        x = jnp.pad(x, ((0, bp - B), (0, 0)))           # only hit when no divisor tile exists
    # Noise placed directly into the z lanes of a full-lane bf16 slab (lane-aligned
    # with the z output lanes -> no sub-vreg relayout inside the kernel).
    eps_full = jnp.pad(eps.astype(jnp.bfloat16),
                       ((0, bp - B), (2 * n_output, out_w - 3 * n_output)))

    # Resident weights + double-buffered (tb,*) tiles are well under every
    # generation's default scoped-VMEM limit at these shapes; for real scVI gene
    # counts (n_input ~ 10k-30k) on v7x, cap tb further and set vmem_limit_bytes.
    out = pl.pallas_call(
        partial(_encoder_kernel, n_out=n_output),
        out_shape=jax.ShapeDtypeStruct((bp, out_w), jnp.float32),
        grid=(bp // tb,),
        in_specs=[
            pl.BlockSpec((tb, n_input), lambda i: (i, 0)),             # x      (streamed)
            pl.BlockSpec((n_input, n_hidden), lambda i: (0, 0)),       # W1     (resident)
            pl.BlockSpec((1, n_hidden), lambda i: (0, 0)),             # b1     (resident)
            pl.BlockSpec((n_hidden, out_w), lambda i: (0, 0)),         # Wm|Wv|Wm (resident)
            pl.BlockSpec((1, out_w), lambda i: (0, 0)),                # bm|bv|bm (resident)
            pl.BlockSpec((tb, out_w), lambda i: (i, 0)),               # eps    (streamed)
        ],
        out_specs=pl.BlockSpec((tb, out_w), lambda i: (i, 0)),
        compiler_params=pltpu.CompilerParams(
            dimension_semantics=("parallel",),                          # v7x: 2 TCs share tiles
        ),
    )(x, w1f, b1f, whf, bhf, eps_full)

    q_m = out[:B, 0 * n_output:1 * n_output]
    q_v = out[:B, 1 * n_output:2 * n_output]
    z = out[:B, 2 * n_output:3 * n_output]
    return q_m, q_v, z


def init_params(key, n_input, n_hidden, n_output):
    """Deterministic synthetic parameters (shapes match the nn.Module, eval mode)."""
    ks = jax.random.split(key, 10)
    s1 = 1.0 / jnp.sqrt(n_input)
    sh = 1.0 / jnp.sqrt(n_hidden)
    return {
        # FCLayers Layer 0: Linear(n_input, n_hidden), stored as [n_input, n_hidden]
        "w1": jax.random.uniform(ks[0], (n_input, n_hidden), jnp.float32, -s1, s1),
        "b1": jax.random.uniform(ks[1], (1, n_hidden), jnp.float32, -s1, s1),
        # BatchNorm1d(n_hidden) eval-mode affine params + running stats (non-trivial)
        "gamma": jax.random.uniform(ks[2], (1, n_hidden), jnp.float32, 0.5, 1.5),
        "beta": 0.1 * jax.random.normal(ks[3], (1, n_hidden), jnp.float32),
        "rmean": 0.1 * jax.random.normal(ks[4], (1, n_hidden), jnp.float32),
        "rvar": jax.random.uniform(ks[5], (1, n_hidden), jnp.float32, 0.5, 1.5),
        # mean_encoder / var_encoder: Linear(n_hidden, n_output)
        "wm": jax.random.uniform(ks[6], (n_hidden, n_output), jnp.float32, -sh, sh),
        "bm": jax.random.uniform(ks[7], (1, n_output), jnp.float32, -sh, sh),
        "wv": jax.random.uniform(ks[8], (n_hidden, n_output), jnp.float32, -sh, sh),
        "bv": jax.random.uniform(ks[9], (1, n_output), jnp.float32, -sh, sh),
    }


if __name__ == "__main__":
    key = jax.random.PRNGKey(0)
    k_x, k_p, k_e = jax.random.split(key, 3)

    # Small but tile-meaningful shapes: two 128-row batch tiles.
    B, n_input, n_hidden, n_output = 256, 256, 128, 16

    x = jax.random.normal(k_x, (B, n_input), jnp.float32)
    params = init_params(k_p, n_input, n_hidden, n_output)
    eps = jax.random.normal(k_e, (B, n_output), jnp.float32)   # reparameterization noise

    q_m, q_v, latent = encoder_forward(x, params, eps)
    jax.block_until_ready((q_m, q_v, latent))

    # --- Pure-JAX reference: original unfused eval-mode module semantics (f32) ---
    inv_std = lax.rsqrt(params["rvar"] + BN_EPS)
    h_ref = jnp.maximum(
        params["gamma"] * (x @ params["w1"] + params["b1"] - params["rmean"]) * inv_std
        + params["beta"], 0.0)
    qm_ref = h_ref @ params["wm"] + params["bm"]
    qv_ref = jnp.exp(h_ref @ params["wv"] + params["bv"]) + VAR_EPS
    eps_bf = eps.astype(jnp.bfloat16).astype(jnp.float32)       # kernel receives bf16 noise
    z_ref = qm_ref + jnp.sqrt(qv_ref) * eps_bf

    assert q_m.shape == (B, n_output) and q_v.shape == (B, n_output)
    assert latent.shape == (B, n_output)
    # bf16 MXU operands => loosened tolerances.
    assert jnp.allclose(q_m, qm_ref, atol=3e-2, rtol=3e-2), "q_m mismatch"
    assert jnp.allclose(q_v, qv_ref, atol=3e-2, rtol=3e-2), "q_v mismatch"
    assert jnp.allclose(latent, z_ref, atol=8e-2, rtol=5e-2), "latent mismatch"
    assert bool(jnp.all(q_v > 0)) and bool(jnp.all(jnp.isfinite(latent)))

    print("KERNEL_OK")
</pallas_src>

<mosaic_0001>
module attributes {stable_mosaic.version = 11 : i64} {
  func.func @_encoder_kernel(%arg0: i32, %arg1: memref<128x256xf32, #tpu.memory_space<vmem>>, %arg2: memref<256x128xbf16, #tpu.memory_space<vmem>>, %arg3: memref<1x128xf32, #tpu.memory_space<vmem>>, %arg4: memref<128x128xbf16, #tpu.memory_space<vmem>>, %arg5: memref<1x128xf32, #tpu.memory_space<vmem>>, %arg6: memref<128x128xbf16, #tpu.memory_space<vmem>>, %arg7: memref<128x128xf32, #tpu.memory_space<vmem>>) attributes {dimension_semantics = [#tpu.dimension_semantics<parallel>], iteration_bounds = array<i64: 2>, scalar_prefetch = 0 : i64, scratch_operands = 0 : i64, tpu.core_type = #tpu.core_type<tc>, window_params = [{transform_indices = @transform_0, window_bounds = array<i64: 128, 256>}, {pipeline_mode = #tpu.pipeline_mode<synchronous>, transform_indices = @transform_1, window_bounds = array<i64: 256, 128>}, {pipeline_mode = #tpu.pipeline_mode<synchronous>, transform_indices = @transform_2, window_bounds = array<i64: 1, 128>}, {pipeline_mode = #tpu.pipeline_mode<synchronous>, transform_indices = @transform_3, window_bounds = array<i64: 128, 128>}, {pipeline_mode = #tpu.pipeline_mode<synchronous>, transform_indices = @transform_4, window_bounds = array<i64: 1, 128>}, {transform_indices = @transform_5, window_bounds = array<i64: 128, 128>}, {transform_indices = @transform_6, window_bounds = array<i64: 128, 128>}]} {
    %c0 = arith.constant 0 : index
    %c0_0 = arith.constant 0 : index
    %0 = vector.load %arg1[%c0, %c0_0] : memref<128x256xf32, #tpu.memory_space<vmem>>, vector<128x256xf32>
    %1 = arith.truncf %0 : vector<128x256xf32> to vector<128x256xbf16>
    %c0_1 = arith.constant 0 : index
    %c0_2 = arith.constant 0 : index
    %2 = vector.load %arg2[%c0_1, %c0_2] : memref<256x128xbf16, #tpu.memory_space<vmem>>, vector<256x128xbf16>
    %cst = arith.constant dense<0.000000e+00> : vector<128x128xf32>
    %3 = tpu.matmul %1, %2, %cst {dimension_numbers = #tpu.dot_dimension_numbers<[1], [0], [0], [1], [0, 0, 1, 1], [], []>} : vector<128x256xbf16>, vector<256x128xbf16>, vector<128x128xf32> -> vector<128x128xf32>
    %c0_3 = arith.constant 0 : index
    %c0_4 = arith.constant 0 : index
    %4 = vector.load %arg3[%c0_3, %c0_4] : memref<1x128xf32, #tpu.memory_space<vmem>>, vector<1x128xf32>
    %5 = vector.broadcast %4 : vector<1x128xf32> to vector<128x128xf32>
    %6 = arith.addf %3, %5 : vector<128x128xf32>
    %cst_5 = arith.constant 0.000000e+00 : f32
    %7 = vector.broadcast %cst_5 : f32 to vector<128x128xf32>
    %8 = arith.maximumf %6, %7 : vector<128x128xf32>
    %9 = arith.truncf %8 : vector<128x128xf32> to vector<128x128xbf16>
    %c0_6 = arith.constant 0 : index
    %c0_7 = arith.constant 0 : index
    %10 = vector.load %arg4[%c0_6, %c0_7] : memref<128x128xbf16, #tpu.memory_space<vmem>>, vector<128x128xbf16>
    %cst_8 = arith.constant dense<0.000000e+00> : vector<128x128xf32>
    %11 = tpu.matmul %9, %10, %cst_8 {dimension_numbers = #tpu.dot_dimension_numbers<[1], [0], [0], [1], [0, 0, 1, 1], [], []>} : vector<128x128xbf16>, vector<128x128xbf16>, vector<128x128xf32> -> vector<128x128xf32>
    %c0_9 = arith.constant 0 : index
    %c0_10 = arith.constant 0 : index
    %12 = vector.load %arg5[%c0_9, %c0_10] : memref<1x128xf32, #tpu.memory_space<vmem>>, vector<1x128xf32>
    %13 = vector.broadcast %12 : vector<1x128xf32> to vector<128x128xf32>
    %14 = arith.addf %11, %13 : vector<128x128xf32>
    %15 = tpu.iota {dimensions = array<i32: 1>} : vector<128x128xi32>
    %c16_i32 = arith.constant 16 : i32
    %16 = vector.broadcast %c16_i32 : i32 to vector<128x128xi32>
    %17 = arith.cmpi sge, %15, %16 : vector<128x128xi32>
    %c32_i32 = arith.constant 32 : i32
    %18 = vector.broadcast %c32_i32 : i32 to vector<128x128xi32>
    %19 = arith.cmpi slt, %15, %18 : vector<128x128xi32>
    %20 = arith.andi %17, %19 : vector<128x128xi1>
    %c32_i32_11 = arith.constant 32 : i32
    %21 = vector.broadcast %c32_i32_11 : i32 to vector<128x128xi32>
    %22 = arith.cmpi sge, %15, %21 : vector<128x128xi32>
    %c48_i32 = arith.constant 48 : i32
    %23 = vector.broadcast %c48_i32 : i32 to vector<128x128xi32>
    %24 = arith.cmpi slt, %15, %23 : vector<128x128xi32>
    %25 = arith.andi %22, %24 : vector<128x128xi1>
    %26 = math.exp %14 : vector<128x128xf32>
    %cst_12 = arith.constant 9.99999974E-5 : f32
    %27 = vector.broadcast %cst_12 : f32 to vector<128x128xf32>
    %28 = arith.addf %26, %27 : vector<128x128xf32>
    %29 = math.sqrt %28 : vector<128x128xf32>
    %30 = vector.extract_strided_slice %29 {offsets = [0, 112], sizes = [128, 16], strides = [1, 1]} : vector<128x128xf32> to vector<128x16xf32>
    %31 = vector.extract_strided_slice %29 {offsets = [0, 0], sizes = [128, 112], strides = [1, 1]} : vector<128x128xf32> to vector<128x112xf32>
    %32 = tpu.concatenate %30, %31 in 1 : vector<128x16xf32>, vector<128x112xf32> -> vector<128x128xf32>
    %33 = arith.select %20, %28, %14 : vector<128x128xi1>, vector<128x128xf32>
    %c0_13 = arith.constant 0 : index
    %c0_14 = arith.constant 0 : index
    %34 = vector.load %arg6[%c0_13, %c0_14] : memref<128x128xbf16, #tpu.memory_space<vmem>>, vector<128x128xbf16>
    %35 = arith.extf %34 : vector<128x128xbf16> to vector<128x128xf32>
    %36 = arith.mulf %32, %35 : vector<128x128xf32>
    %37 = arith.addf %14, %36 : vector<128x128xf32>
    %38 = arith.select %25, %37, %33 : vector<128x128xi1>, vector<128x128xf32>
    %c0_15 = arith.constant 0 : index
    %c0_16 = arith.constant 0 : index
    %39 = vector.load %arg7[%c0_15, %c0_16] : memref<128x128xf32, #tpu.memory_space<vmem>>, vector<128x128xf32>
    tpu.vector_store %arg7[%c0_15, %c0_16], %38 {strides = array<i32>} : memref<128x128xf32, #tpu.memory_space<vmem>>, vector<128x128xf32>,
    return
  }
  func.func @transform_0(%arg0: i32) -> (i32, i32) {
    %c0_i32 = arith.constant 0 : i32
    %c0_i32_0 = arith.constant 0 : i32
    return %arg0, %c0_i32 : i32, i32
  }
  func.func @transform_1(%arg0: i32) -> (i32, i32) {
    %c0_i32 = arith.constant 0 : i32
    %c0_i32_0 = arith.constant 0 : i32
    %c0_i32_1 = arith.constant 0 : i32
    return %c0_i32, %c0_i32_0 : i32, i32
  }
  func.func @transform_2(%arg0: i32) -> (i32, i32) {
    %c0_i32 = arith.constant 0 : i32
    %c0_i32_0 = arith.constant 0 : i32
    %c0_i32_1 = arith.constant 0 : i32
    return %c0_i32, %c0_i32_0 : i32, i32
  }
  func.func @transform_3(%arg0: i32) -> (i32, i32) {
    %c0_i32 = arith.constant 0 : i32
    %c0_i32_0 = arith.constant 0 : i32
    %c0_i32_1 = arith.constant 0 : i32
    return %c0_i32, %c0_i32_0 : i32, i32
  }
  func.func @transform_4(%arg0: i32) -> (i32, i32) {
    %c0_i32 = arith.constant 0 : i32
    %c0_i32_0 = arith.constant 0 : i32
    %c0_i32_1 = arith.constant 0 : i32
    return %c0_i32, %c0_i32_0 : i32, i32
  }
  func.func @transform_5(%arg0: i32) -> (i32, i32) {
    %c0_i32 = arith.constant 0 : i32
    %c0_i32_0 = arith.constant 0 : i32
    return %arg0, %c0_i32 : i32, i32
  }
  func.func @transform_6(%arg0: i32) -> (i32, i32) {
    %c0_i32 = arith.constant 0 : i32
    %c0_i32_0 = arith.constant 0 : i32
    return %arg0, %c0_i32 : i32, i32
  }
}

</mosaic_0001>

<llo_original>
// kernel: encoder_forward.1
$region0: #{encoder_forward.1}
  #allocation0 [shape = 'u32[]', space=smem, size = 0x4, offset = 0x4, fixed_abs, tag = 'smem constant byte address 0x4 - core index']
  #allocation1 [shape = 'u32[144,128]{1,0:T(1,128)}', space=vmem, size = 0x12000, scoped, tag = 'internal scratch']
  %s0 = inlined_call_operand.vmem [shape: f32[256,256], index: 0, kind: input, shape index: {}]
  %s1 = inlined_call_operand.vmem [shape: bf16[256,128], index: 1, kind: input, shape index: {}]
  %s2 = inlined_call_operand.vmem [shape: f32[1,128], index: 2, kind: input, shape index: {}]
  %s3 = inlined_call_operand.vmem [shape: bf16[128,128], index: 3, kind: input, shape index: {}]
  %s4 = inlined_call_operand.vmem [shape: f32[1,128], index: 4, kind: input, shape index: {}]
  %s5 = inlined_call_operand.vmem [shape: bf16[256,128], index: 5, kind: input, shape index: {}]
  %s6 = inlined_call_operand.vmem [shape: f32[256,128], index: 6, kind: output, shape index: {}]
  %s7 = sld [smem:[#allocation0]]
  $region57: #{encoder_forward.1} parent=0
    _
  %s9 = ssub.s32 1, %s7
  %s10 = scalar_select 0, %s9, %s7
  loop: start=0, step=1, limit=4
  $region2: #{encoder_forward.1} parent=0 // loop_pre_header
    _
  $region3: #{encoder_forward.1} parent=0 // loop_header
    %s12 = sphi 0, %s16
    %p13 = scmp.ge.s32.totalorder %s12, 4
    %s22 = sphi 0, %s24
    %s25 = sphi 0, %s22
    %s26 = sphi 0, %s25
    %s42 = sphi 0, %s26
    %s46 = sphi 0, %s46
    %s48 = sphi 0, %s46
    %s49 = sphi 0, %s48
    %s63 = sphi 0, %s49
    %s67 = sphi 0, %s67
    %s69 = sphi 0, %s67
    %s70 = sphi 0, %s69
    %s84 = sphi 0, %s70
    %s88 = sphi 0, %s88
    %s90 = sphi 0, %s88
    %s91 = sphi 0, %s90
    %s105 = sphi 0, %s91
    %s109 = sphi 0, %s109
    %s111 = sphi 0, %s109
    %s112 = sphi 0, %s111
    %s126 = sphi 0, %s112
    %s132 = sphi 0, %s134
    %s135 = sphi 0, %s132
    %s136 = sphi 0, %s135
    %s152 = sphi 0, %s136
    %s158 = sphi 0, %s160
    %s161 = sphi 0, %s158
    %s162 = sphi 0, %s161
    %s178 = sphi 0, %s162
  $region4: #{encoder_forward.1} parent=0 // loop_header_branch
    %15 = sbr.rel (%p13) target = $region8
  $region5: #{encoder_forward.1} parent=0 // loop_body
    %s17 = ssub.s32 %s12, 1
    %s18 = ssub.s32 %s12, 2
    %s19 = sadd.s32 %s12, 1
    %s20 = ssub.s32 %s12, %s19
    %p21 = scmp.eq.s32.totalorder %s20, 0
    %s23 = sadd.s32 %s22, 1
    %s24 = scalar_select %p21, %s22, %s23
    %p27 = pneg %p21
    %p28 = scmp.eq.s32.totalorder %s12, 1
    %p29 = por %p27, %p28
    %p30 = scmp.ne.s32.totalorder %s22, %s25
    %p31 = scmp.eq.s32.totalorder %s12, 0
    %p32 = por %p30, %p31
    %p33 = scmp.ne.s32.totalorder %s22, %s25
    %p34 = scmp.eq.s32.totalorder %s17, 1
    %p35 = por %p33, %p34
    %p36 = scmp.ne.s32.totalorder %s25, %s26
    %p37 = scmp.eq.s32.totalorder %s17, 0
    %p38 = por %p36, %p37
    %p39 = scmp.ne.s32.totalorder %s25, %s26
    %p40 = scmp.eq.s32.totalorder %s18, 1
    %p41 = por %p39, %p40
    %p43 = scmp.ne.s32.totalorder %s26, %s42
    %p44 = scmp.eq.s32.totalorder %s18, 0
    %p45 = por %p43, %p44
    %s47 = sadd.s32 %s46, 1
    %p50 = scmp.eq.s32.totalorder %s12, 1
    %p51 = scmp.ne.s32.totalorder %s46, %s48
    %p52 = scmp.eq.s32.totalorder %s12, 0
    %p53 = por %p51, %p52
    %p54 = scmp.ne.s32.totalorder %s46, %s48
    %p55 = scmp.eq.s32.totalorder %s17, 1
    %p56 = por %p54, %p55
    %p57 = scmp.ne.s32.totalorder %s48, %s49
    %p58 = scmp.eq.s32.totalorder %s17, 0
    %p59 = por %p57, %p58
    %p60 = scmp.ne.s32.totalorder %s48, %s49
    %p61 = scmp.eq.s32.totalorder %s18, 1
    %p62 = por %p60, %p61
    %p64 = scmp.ne.s32.totalorder %s49, %s63
    %p65 = scmp.eq.s32.totalorder %s18, 0
    %p66 = por %p64, %p65
    %s68 = sadd.s32 %s67, 1
    %p71 = scmp.eq.s32.totalorder %s12, 1
    %p72 = scmp.ne.s32.totalorder %s67, %s69
    %p73 = scmp.eq.s32.totalorder %s12, 0
    %p74 = por %p72, %p73
    %p75 = scmp.ne.s32.totalorder %s67, %s69
    %p76 = scmp.eq.s32.totalorder %s17, 1
    %p77 = por %p75, %p76
    %p78 = scmp.ne.s32.totalorder %s69, %s70
    %p79 = scmp.eq.s32.totalorder %s17, 0
    %p80 = por %p78, %p79
    %p81 = scmp.ne.s32.totalorder %s69, %s70
    %p82 = scmp.eq.s32.totalorder %s18, 1
    %p83 = por %p81, %p82
    %p85 = scmp.ne.s32.totalorder %s70, %s84
    %p86 = scmp.eq.s32.totalorder %s18, 0
    %p87 = por %p85, %p86
    %s89 = sadd.s32 %s88, 1
    %p92 = scmp.eq.s32.totalorder %s12, 1
    %p93 = scmp.ne.s32.totalorder %s88, %s90
    %p94 = scmp.eq.s32.totalorder %s12, 0
    %p95 = por %p93, %p94
    %p96 = scmp.ne.s32.totalorder %s88, %s90
    %p97 = scmp.eq.s32.totalorder %s17, 1
    %p98 = por %p96, %p97
    %p99 = scmp.ne.s32.totalorder %s90, %s91
    %p100 = scmp.eq.s32.totalorder %s17, 0
    %p101 = por %p99, %p100
    %p102 = scmp.ne.s32.totalorder %s90, %s91
    %p103 = scmp.eq.s32.totalorder %s18, 1
    %p104 = por %p102, %p103
    %p106 = scmp.ne.s32.totalorder %s91, %s105
    %p107 = scmp.eq.s32.totalorder %s18, 0
    %p108 = por %p106, %p107
    %s110 = sadd.s32 %s109, 1
    %p113 = scmp.eq.s32.totalorder %s12, 1
    %p114 = scmp.ne.s32.totalorder %s109, %s111
    %p115 = scmp.eq.s32.totalorder %s12, 0
    %p116 = por %p114, %p115
    %p117 = scmp.ne.s32.totalorder %s109, %s111
    %p118 = scmp.eq.s32.totalorder %s17, 1
    %p119 = por %p117, %p118
    %p120 = scmp.ne.s32.totalorder %s111, %s112
    %p121 = scmp.eq.s32.totalorder %s17, 0
    %p122 = por %p120, %p121
    %p123 = scmp.ne.s32.totalorder %s111, %s112
    %p124 = scmp.eq.s32.totalorder %s18, 1
    %p125 = por %p123, %p124
    %p127 = scmp.ne.s32.totalorder %s112, %s126
    %p128 = scmp.eq.s32.totalorder %s18, 0
    %p129 = por %p127, %p128
    %s130 = ssub.s32 %s12, %s19
    %p131 = scmp.eq.s32.totalorder %s130, 0
    %s133 = sadd.s32 %s132, 1
    %s134 = scalar_select %p131, %s132, %s133
    %p137 = pneg %p131
    %p138 = scmp.eq.s32.totalorder %s12, 1
    %p139 = por %p137, %p138
    %p140 = scmp.ne.s32.totalorder %s132, %s135
    %p141 = scmp.eq.s32.totalorder %s12, 0
    %p142 = por %p140, %p141
    %p143 = scmp.ne.s32.totalorder %s132, %s135
    %p144 = scmp.eq.s32.totalorder %s17, 1
    %p145 = por %p143, %p144
    %p146 = scmp.ne.s32.totalorder %s135, %s136
    %p147 = scmp.eq.s32.totalorder %s17, 0
    %p148 = por %p146, %p147
    %p149 = scmp.ne.s32.totalorder %s135, %s136
    %p150 = scmp.eq.s32.totalorder %s18, 1
    %p151 = por %p149, %p150
    %p153 = scmp.ne.s32.totalorder %s136, %s152
    %p154 = scmp.eq.s32.totalorder %s18, 0
    %p155 = por %p153, %p154
    %s156 = ssub.s32 %s12, %s19
    %p157 = scmp.eq.s32.totalorder %s156, 0
    %s159 = sadd.s32 %s158, 1
    %s160 = scalar_select %p157, %s158, %s159
    %p163 = pneg %p157
    %p164 = scmp.eq.s32.totalorder %s12, 1
    %p165 = por %p163, %p164
    %p166 = scmp.ne.s32.totalorder %s158, %s161
    %p167 = scmp.eq.s32.totalorder %s12, 0
    %p168 = por %p166, %p167
    %p169 = scmp.ne.s32.totalorder %s158, %s161
    %p170 = scmp.eq.s32.totalorder %s17, 1
    %p171 = por %p169, %p170
    %p172 = scmp.ne.s32.totalorder %s161, %s162
    %p173 = scmp.eq.s32.totalorder %s17, 0
    %p174 = por %p172, %p173
    %p175 = scmp.ne.s32.totalorder %s161, %s162
    %p176 = scmp.eq.s32.totalorder %s18, 1
    %p177 = por %p175, %p176
    %p179 = scmp.ne.s32.totalorder %s162, %s178
    %p180 = scmp.eq.s32.totalorder %s18, 0
    %p181 = por %p179, %p180
    %p182 = scmp.le.s32.totalorder 1, %s12
    %p183 = scmp.lt.s32.totalorder %s12, 3
    %p184 = pnand %p182, %p183
    %p185 = pneg %p184
    // Predicated region
    $region9: #{encoder_forward.1} parent=5 // pred_check
      _
    $region10: #{encoder_forward.1} parent=5 // pred_check_branch
      %187 = sbr.rel (%p184) target = $region12
    $region11: #{encoder_forward.1} parent=5 // pred_region
      %s188 = ssub.s32 %s12, 1
      // Predicated region
      $region13: #{encoder_forward.1} parent=11 // pred_check
        %p189 = pneg %p59
      $region14: #{encoder_forward.1} parent=11 // pred_check_branch
        %191 = sbr.rel (%p189) target = $region16
      $region15: #{encoder_forward.1} parent=11 // pred_region
        _
      $region16: #{encoder_forward.1} parent=11 // pred_fallthru
        _
      // Predicated region
      $region17: #{encoder_forward.1} parent=11 // pred_check
        %p192 = pneg %p80
      $region18: #{encoder_forward.1} parent=11 // pred_check_branch
        %194 = sbr.rel (%p192) target = $region20
      $region19: #{encoder_forward.1} parent=11 // pred_region
        _
      $region20: #{encoder_forward.1} parent=11 // pred_fallthru
        _
      // Predicated region
      $region21: #{encoder_forward.1} parent=11 // pred_check
        %p195 = pneg %p101
      $region22: #{encoder_forward.1} parent=11 // pred_check_branch
        %197 = sbr.rel (%p195) target = $region24
      $region23: #{encoder_forward.1} parent=11 // pred_region
        _
      $region24: #{encoder_forward.1} parent=11 // pred_fallthru
        _
      // Predicated region
      $region25: #{encoder_forward.1} parent=11 // pred_check
        %p198 = pneg %p122
      $region26: #{encoder_forward.1} parent=11 // pred_check_branch
        %200 = sbr.rel (%p198) target = $region28
      $region27: #{encoder_forward.1} parent=11 // pred_region
        _
      $region28: #{encoder_forward.1} parent=11 // pred_fallthru
        _
    $region12: #{encoder_forward.1} parent=5 // pred_fallthru
      _
    %p201 = scmp.lt.s32.totalorder %s12, 2
    // Predicated region
    $region29: #{encoder_forward.1} parent=5 // pred_check
      %p202 = pneg %p201
    $region30: #{encoder_forward.1} parent=5 // pred_check_branch
      %204 = sbr.rel (%p202) target = $region32
    $region31: #{encoder_forward.1} parent=5 // pred_region
      // Predicated region
      $region33: #{encoder_forward.1} parent=31 // pred_check
        %p205 = pneg %p32
      $region34: #{encoder_forward.1} parent=31 // pred_check_branch
        %207 = sbr.rel (%p205) target = $region36
      $region35: #{encoder_forward.1} parent=31 // pred_region
        %s208 = smul.u32 16, %s12
        %p209 = scmp.lt.s32.totalorder %s208, 31
        %s210 = scalar_select %p209, %s208, 31
        %s211 = smul.addr %s210, 2
        %s212 = smul.addr %s211, 8
        %s213 = scalar_lea.vmem %s0, %s212
        %s214 = smul.u32 16, %s12
      $region36: #{encoder_forward.1} parent=31 // pred_fallthru
        _
      // Predicated region
      $region37: #{encoder_forward.1} parent=31 // pred_check
        %p215 = pneg %p142
      $region38: #{encoder_forward.1} parent=31 // pred_check_branch
        %217 = sbr.rel (%p215) target = $region40
      $region39: #{encoder_forward.1} parent=31 // pred_region
        %s218 = smul.u32 16, %s12
        %p219 = scmp.lt.s32.totalorder %s218, 31
        %s220 = scalar_select %p219, %s218, 31
        %s221 = smul.addr %s220, 4
        %s222 = scalar_lea.vmem %s5, %s221
        %s223 = smul.u32 16, %s12
      $region40: #{encoder_forward.1} parent=31 // pred_fallthru
        _
    $region32: #{encoder_forward.1} parent=5 // pred_fallthru
      _
    %p224 = scmp.le.s32.totalorder 1, %s12
    %p225 = scmp.lt.s32.totalorder %s12, 3
    %p226 = pnand %p224, %p225
    %p227 = pneg %p226
    // Predicated region
    $region41: #{encoder_forward.1} parent=5 // pred_check
      _
    $region42: #{encoder_forward.1} parent=5 // pred_check_branch
      %229 = sbr.rel (%p226) target = $region44
    $region43: #{encoder_forward.1} parent=5 // pred_region
      %s230 = ssub.s32 %s12, 1
      %s231 = smul.u32 16, %s17
      %p232 = scmp.lt.s32.totalorder %s231, 31
      %s233 = scalar_select %p232, %s231, 31
      %s234 = smul.addr %s233, 2
      %s235 = smul.addr %s234, 8
      %s236 = scalar_lea.vmem %s0, %s235
      %p237 = pneg %p38
      %p238 = pneg %p35
      %p239 = pneg %p59
      %p240 = pneg %p56
      %p241 = pneg %p80
      %p242 = pneg %p77
      %p243 = pneg %p101
      %p244 = pneg %p98
      %p245 = pneg %p122
      %p246 = pneg %p119
      %s247 = smul.u32 16, %s17
      %p248 = scmp.lt.s32.totalorder %s247, 31
      %s249 = scalar_select %p248, %s247, 31
      %s250 = smul.addr %s249, 4
      %s251 = scalar_lea.vmem %s5, %s250
      %p252 = pneg %p148
      %p253 = pneg %p145
      %p254 = pneg %p174
      %p255 = pneg %p171
      %s256 = smul.u32 16, %s17
      %p257 = scmp.lt.s32.totalorder %s256, 31
      %s258 = scalar_select %p257, %s256, 31
      %s259 = smul.addr %s258, 8
      %s260 = scalar_lea.vmem %s6, %s259
      %s261 = smul.u32 16, %s17
      %p262 = scmp.lt.s32.totalorder %s261, 31
      %s263 = scalar_select %p262, %s261, 31
      %s264 = smul.addr %s263, 2
      %s265 = smul.addr %s264, 8
      %s266 = scalar_lea.vmem %s0, %s265
      %s267 = smul.u32 16, %s17
      %s268 = smul.u32 16, %s17
      %p269 = scmp.lt.s32.totalorder %s268, 31
      %s270 = scalar_select %p269, %s268, 31
      %s271 = smul.addr %s270, 4
      %s272 = scalar_lea.vmem %s5, %s271
      %s273 = smul.u32 16, %s17
      %s274 = smul.u32 16, %s17
      %p275 = scmp.lt.s32.totalorder %s274, 31
      %s276 = scalar_select %p275, %s274, 31
      %s277 = smul.addr %s276, 8
      %s278 = scalar_lea.vmem %s6, %s277
      %s279 = smul.u32 16, %s17
      %v281 = vld [vmem:[%s266] sm:$0xff]
      %v282 = vld [vmem:[%s266 + $0x8] sm:$0xff]
      %v283 = vld [vmem:[%s266 + $0x10] sm:$0xff]
      %v284 = vld [vmem:[%s266 + $0x18] sm:$0xff]
      %v285 = vld [vmem:[%s266 + $0x20] sm:$0xff]
      %v286 = vld [vmem:[%s266 + $0x28] sm:$0xff]
      %v287 = vld [vmem:[%s266 + $0x30] sm:$0xff]
      %v288 = vld [vmem:[%s266 + $0x38] sm:$0xff]
      %v289 = vld [vmem:[%s266 + $0x40] sm:$0xff]
      %v290 = vld [vmem:[%s266 + $0x48] sm:$0xff]
      %v291 = vld [vmem:[%s266 + $0x50] sm:$0xff]
      %v292 = vld [vmem:[%s266 + $0x58] sm:$0xff]
      %v293 = vld [vmem:[%s266 + $0x60] sm:$0xff]
      %v294 = vld [vmem:[%s266 + $0x68] sm:$0xff]
      %v295 = vld [vmem:[%s266 + $0x70] sm:$0xff]
      %v296 = vld [vmem:[%s266 + $0x78] sm:$0xff]
      %v297 = vld [vmem:[%s266 + $0x80] sm:$0xff]
      %v298 = vld [vmem:[%s266 + $0x88] sm:$0xff]
      %v299 = vld [vmem:[%s266 + $0x90] sm:$0xff]
      %v300 = vld [vmem:[%s266 + $0x98] sm:$0xff]
      %v301 = vld [vmem:[%s266 + $0xa0] sm:$0xff]
      %v302 = vld [vmem:[%s266 + $0xa8] sm:$0xff]
      %v303 = vld [vmem:[%s266 + $0xb0] sm:$0xff]
      %v304 = vld [vmem:[%s266 + $0xb8] sm:$0xff]
      %v305 = vld [vmem:[%s266 + $0xc0] sm:$0xff]
      %v306 = vld [vmem:[%s266 + $0xc8] sm:$0xff]
      %v307 = vld [vmem:[%s266 + $0xd0] sm:$0xff]
      %v308 = vld [vmem:[%s266 + $0xd8] sm:$0xff]
      %v309 = vld [vmem:[%s266 + $0xe0] sm:$0xff]
      %v310 = vld [vmem:[%s266 + $0xe8] sm:$0xff]
      %v311 = vld [vmem:[%s266 + $0xf0] sm:$0xff]
      %v312 = vld [vmem:[%s266 + $0xf8] sm:$0xff]
      %v313 = vpack.c.bf16 %v283, %v281
      %v314 = vpack.c.bf16 %v284, %v282
      %v315 = vpack.c.bf16 %v287, %v285
      %v316 = vpack.c.bf16 %v288, %v286
      %v317 = vpack.c.bf16 %v291, %v289
      %v318 = vpack.c.bf16 %v292, %v290
      %v319 = vpack.c.bf16 %v295, %v293
      %v320 = vpack.c.bf16 %v296, %v294
      %v321 = vpack.c.bf16 %v299, %v297
      %v322 = vpack.c.bf16 %v300, %v298
      %v323 = vpack.c.bf16 %v303, %v301
      %v324 = vpack.c.bf16 %v304, %v302
      %v325 = vpack.c.bf16 %v307, %v305
      %v326 = vpack.c.bf16 %v308, %v306
      %v327 = vpack.c.bf16 %v311, %v309
      %v328 = vpack.c.bf16 %v312, %v310
      %v329 = vld [vmem:[%s1] sm:$0xf]
      %v330 = vld [vmem:[%s1 + $0x4] sm:$0xf]
      %v331 = vld [vmem:[%s1 + $0x8] sm:$0xf]
      %v332 = vld [vmem:[%s1 + $0xc] sm:$0xf]
      %v333 = vld [vmem:[%s1 + $0x10] sm:$0xf]
      %v334 = vld [vmem:[%s1 + $0x14] sm:$0xf]
      %v335 = vld [vmem:[%s1 + $0x18] sm:$0xf]
      %v336 = vld [vmem:[%s1 + $0x1c] sm:$0xf]
      %v337 = vld [vmem:[%s1 + $0x20] sm:$0xf]
      %v338 = vld [vmem:[%s1 + $0x24] sm:$0xf]
      %v339 = vld [vmem:[%s1 + $0x28] sm:$0xf]
      %v340 = vld [vmem:[%s1 + $0x2c] sm:$0xf]
      %v341 = vld [vmem:[%s1 + $0x30] sm:$0xf]
      %v342 = vld [vmem:[%s1 + $0x34] sm:$0xf]
      %v343 = vld [vmem:[%s1 + $0x38] sm:$0xf]
      %v344 = vld [vmem:[%s1 + $0x3c] sm:$0xf]
      %v345 = vld [vmem:[%s1 + $0x40] sm:$0xf]
      %v346 = vld [vmem:[%s1 + $0x44] sm:$0xf]
      %v347 = vld [vmem:[%s1 + $0x48] sm:$0xf]
      %v348 = vld [vmem:[%s1 + $0x4c] sm:$0xf]
      %v349 = vld [vmem:[%s1 + $0x50] sm:$0xf]
      %v350 = vld [vmem:[%s1 + $0x54] sm:$0xf]
      %v351 = vld [vmem:[%s1 + $0x58] sm:$0xf]
      %v352 = vld [vmem:[%s1 + $0x5c] sm:$0xf]
      %v353 = vld [vmem:[%s1 + $0x60] sm:$0xf]
      %v354 = vld [vmem:[%s1 + $0x64] sm:$0xf]
      %v355 = vld [vmem:[%s1 + $0x68] sm:$0xf]
      %v356 = vld [vmem:[%s1 + $0x6c] sm:$0xf]
      %v357 = vld [vmem:[%s1 + $0x70] sm:$0xf]
      %v358 = vld [vmem:[%s1 + $0x74] sm:$0xf]
      %v359 = vld [vmem:[%s1 + $0x78] sm:$0xf]
      %v360 = vld [vmem:[%s1 + $0x7c] sm:$0xf]
      %v361 = vld [vmem:[%s2] sm:$0x1]
      %v363 = vlaneseq
      %v364 = vshrl.u32 %v363, 7
      %v365 = vsub.s32 0, %v364
      %v366 = vrot.slane %v361, %v365
      %v400 = vunpack.c.l.b16 %v329
      %v401 = vunpack.c.l.b16 %v330
      %v402 = vunpack.c.l.b16 %v331
      %v403 = vunpack.c.l.b16 %v332
      %v404 = vunpack.c.l.b16 %v333
      %v405 = vunpack.c.l.b16 %v334
      %v406 = vunpack.c.l.b16 %v335
      %v407 = vunpack.c.l.b16 %v336
      %v408 = vunpack.c.l.b16 %v337
      %v409 = vunpack.c.l.b16 %v338
      %v410 = vunpack.c.l.b16 %v339
      %v411 = vunpack.c.l.b16 %v340
      %v412 = vunpack.c.l.b16 %v341
      %v413 = vunpack.c.l.b16 %v342
      %v414 = vunpack.c.l.b16 %v343
      %v415 = vunpack.c.l.b16 %v344
      %v416 = vunpack.c.l.b16 %v345
      %v417 = vunpack.c.l.b16 %v346
      %v418 = vunpack.c.l.b16 %v347
      %v419 = vunpack.c.l.b16 %v348
      %v420 = vunpack.c.l.b16 %v349
      %v421 = vunpack.c.l.b16 %v350
      %v422 = vunpack.c.l.b16 %v351
      %v423 = vunpack.c.l.b16 %v352
      %v424 = vunpack.c.l.b16 %v353
      %v425 = vunpack.c.l.b16 %v354
      %v426 = vunpack.c.l.b16 %v355
      %v427 = vunpack.c.l.b16 %v356
      %v428 = vunpack.c.l.b16 %v357
      %v429 = vunpack.c.l.b16 %v358
      %v430 = vunpack.c.l.b16 %v359
      %v431 = vunpack.c.l.b16 %v360
      %v432 = vpack.c.b16 %v401, %v400
      %v433 = vpack.c.b16 %v403, %v402
      %v434 = vpack.c.b16 %v405, %v404
      %v435 = vpack.c.b16 %v407, %v406
      %v436 = vpack.c.b16 %v409, %v408
      %v437 = vpack.c.b16 %v411, %v410
      %v438 = vpack.c.b16 %v413, %v412
      %v439 = vpack.c.b16 %v415, %v414
      %v440 = vpack.c.b16 %v417, %v416
      %v441 = vpack.c.b16 %v419, %v418
      %v442 = vpack.c.b16 %v421, %v420
      %v443 = vpack.c.b16 %v423, %v422
      %v444 = vpack.c.b16 %v425, %v424
      %v445 = vpack.c.b16 %v427, %v426
      %v446 = vpack.c.b16 %v429, %v428
      %v447 = vpack.c.b16 %v431, %v430
      %464 = vmatprep.subr.bf16.mxu0 0
      %465 = vmatpush1.bf16.msra.mxu0 %v439
      %466 = vmatprep.subr.bf16.mxu0 0
      %467 = vmatpush1.bf16.msra.mxu0 %v438
      %468 = vmatprep.subr.bf16.mxu0 0
      %469 = vmatpush1.bf16.msra.mxu0 %v437
      %470 = vmatprep.subr.bf16.mxu0 0
      %471 = vmatpush1.bf16.msra.mxu0 %v436
      %472 = vmatprep.subr.bf16.mxu0 0
      %473 = vmatpush1.bf16.msra.mxu0 %v435
      %474 = vmatprep.subr.bf16.mxu0 0
      %475 = vmatpush1.bf16.msra.mxu0 %v434
      %476 = vmatprep.subr.bf16.mxu0 0
      %477 = vmatpush1.bf16.msra.mxu0 %v433
      %478 = vmatprep.subr.bf16.mxu0 0
      %479 = vmatpush1.bf16.msra.mxu0 %v432
      %480 = vmatprep.subr.bf16.mxu0 0
      %481 = vmatpush2.bf16.msra.mxu0 %v447
      %482 = vmatprep.subr.bf16.mxu0 0
      %483 = vmatpush2.bf16.msra.mxu0 %v446
      %484 = vmatprep.subr.bf16.mxu0 0
      %485 = vmatpush2.bf16.msra.mxu0 %v445
      %486 = vmatprep.subr.bf16.mxu0 0
      %487 = vmatpush2.bf16.msra.mxu0 %v444
      %488 = vmatprep.subr.bf16.mxu0 0
      %489 = vmatpush2.bf16.msra.mxu0 %v443
      %490 = vmatprep.subr.bf16.mxu0 0
      %491 = vmatpush2.bf16.msra.mxu0 %v442
      %492 = vmatprep.subr.bf16.mxu0 0
      %493 = vmatpush2.bf16.msra.mxu0 %v441
      %494 = vmatprep.subr.bf16.mxu0 0
      %495 = vmatpush2.bf16.msra.mxu0 %v440
      %496 = vmatprep.mubr.bf16.mxu0 %v314
      %497 = vmatmul.mubr.bf16.gmra.mxu0 %v313
      %v498 = vpop.f32.mrf.mxu0
      %v499 = vadd.f32 %v366, %v498
      %v500 = vpop.f32.mrf.mxu0
      %v501 = vpop.f32.mrf.mxu0
      %v502 = vadd.f32 %v366, %v501
      %v503 = vpop.f32.mrf.mxu0
      %504 = vmatprep.mubr.bf16.mxu0 %v316
      %505 = vmatmul.mubr.bf16.gmra.mxu0 %v315
      %v506 = vpop.f32.mrf.mxu0
      %v507 = vadd.f32 %v366, %v506
      %v508 = vpop.f32.mrf.mxu0
      %v509 = vpop.f32.mrf.mxu0
      %v510 = vadd.f32 %v366, %v509
      %v511 = vpop.f32.mrf.mxu0
      %512 = vmatprep.mubr.bf16.mxu0 %v318
      %513 = vmatmul.mubr.bf16.gmra.mxu0 %v317
      %v514 = vpop.f32.mrf.mxu0
      %v515 = vadd.f32 %v366, %v514
      %v516 = vpop.f32.mrf.mxu0
      %v517 = vpop.f32.mrf.mxu0
      %v518 = vadd.f32 %v366, %v517
      %v519 = vpop.f32.mrf.mxu0
      %520 = vmatprep.mubr.bf16.mxu0 %v320
      %521 = vmatmul.mubr.bf16.gmra.mxu0 %v319
      %v522 = vpop.f32.mrf.mxu0
      %v523 = vadd.f32 %v366, %v522
      %v524 = vpop.f32.mrf.mxu0
      %v525 = vpop.f32.mrf.mxu0
      %v526 = vadd.f32 %v366, %v525
      %v527 = vpop.f32.mrf.mxu0
      %528 = vmatprep.mubr.bf16.mxu0 %v322
      %529 = vmatmul.mubr.bf16.gmra.mxu0 %v321
      %v530 = vpop.f32.mrf.mxu0
      %v531 = vadd.f32 %v366, %v530
      %v532 = vpop.f32.mrf.mxu0
      %v533 = vpop.f32.mrf.mxu0
      %v534 = vadd.f32 %v366, %v533
      %v535 = vpop.f32.mrf.mxu0
      %536 = vmatprep.mubr.bf16.mxu0 %v324
      %537 = vmatmul.mubr.bf16.gmra.mxu0 %v323
      %v538 = vpop.f32.mrf.mxu0
      %v539 = vadd.f32 %v366, %v538
      %v540 = vpop.f32.mrf.mxu0
      %v541 = vpop.f32.mrf.mxu0
      %v542 = vadd.f32 %v366, %v541
      %v543 = vpop.f32.mrf.mxu0
      %544 = vmatprep.mubr.bf16.mxu0 %v326
      %545 = vmatmul.mubr.bf16.gmra.mxu0 %v325
      %v546 = vpop.f32.mrf.mxu0
      %v547 = vadd.f32 %v366, %v546
      %v548 = vpop.f32.mrf.mxu0
      %v549 = vpop.f32.mrf.mxu0
      %v550 = vadd.f32 %v366, %v549
      %v551 = vpop.f32.mrf.mxu0
      %552 = vmatprep.mubr.bf16.mxu0 %v328
      %553 = vmatmul.mubr.bf16.gmra.mxu0 %v327
      %v554 = vpop.f32.mrf.mxu0
      %v555 = vadd.f32 %v366, %v554
      %v556 = vpop.f32.mrf.mxu0
      %v557 = vpop.f32.mrf.mxu0
      %v558 = vadd.f32 %v366, %v557
      %v559 = vpop.f32.mrf.mxu0
      %560 = vdwg.mxu0
      %v561 = vmax.f32 %v499, 0.0
      %v562 = vmax.f32 %v502, 0.0
      %v563 = vmax.f32 %v507, 0.0
      %v564 = vmax.f32 %v510, 0.0
      %v565 = vmax.f32 %v515, 0.0
      %v566 = vmax.f32 %v518, 0.0
      %v567 = vmax.f32 %v523, 0.0
      %v568 = vmax.f32 %v526, 0.0
      %v569 = vmax.f32 %v531, 0.0
      %v570 = vmax.f32 %v534, 0.0
      %v571 = vmax.f32 %v539, 0.0
      %v572 = vmax.f32 %v542, 0.0
      %v573 = vmax.f32 %v547, 0.0
      %v574 = vmax.f32 %v550, 0.0
      %v575 = vmax.f32 %v555, 0.0
      %v576 = vmax.f32 %v558, 0.0
      %v577 = vpack.c.bf16 %v562, %v561
      %v578 = vpack.c.bf16 %v564, %v563
      %v579 = vpack.c.bf16 %v566, %v565
      %v580 = vpack.c.bf16 %v568, %v567
      %v581 = vpack.c.bf16 %v570, %v569
      %v582 = vpack.c.bf16 %v572, %v571
      %v583 = vpack.c.bf16 %v574, %v573
      %v584 = vpack.c.bf16 %v576, %v575
      %v585 = vld [vmem:[%s3] sm:$0xf]
      %v586 = vld [vmem:[%s3 + $0x4] sm:$0xf]
      %v587 = vld [vmem:[%s3 + $0x8] sm:$0xf]
      %v588 = vld [vmem:[%s3 + $0xc] sm:$0xf]
      %v589 = vld [vmem:[%s3 + $0x10] sm:$0xf]
      %v590 = vld [vmem:[%s3 + $0x14] sm:$0xf]
      %v591 = vld [vmem:[%s3 + $0x18] sm:$0xf]
      %v592 = vld [vmem:[%s3 + $0x1c] sm:$0xf]
      %v593 = vld [vmem:[%s3 + $0x20] sm:$0xf]
      %v594 = vld [vmem:[%s3 + $0x24] sm:$0xf]
      %v595 = vld [vmem:[%s3 + $0x28] sm:$0xf]
      %v596 = vld [vmem:[%s3 + $0x2c] sm:$0xf]
      %v597 = vld [vmem:[%s3 + $0x30] sm:$0xf]
      %v598 = vld [vmem:[%s3 + $0x34] sm:$0xf]
      %v599 = vld [vmem:[%s3 + $0x38] sm:$0xf]
      %v600 = vld [vmem:[%s3 + $0x3c] sm:$0xf]
      %v601 = vld [vmem:[%s4] sm:$0x1]
      %v603 = vlaneseq
      %v604 = vshrl.u32 %v603, 7
      %v605 = vsub.s32 0, %v604
      %v606 = vrot.slane %v601, %v605
      %v624 = vunpack.c.l.b16 %v585
      %v625 = vunpack.c.l.b16 %v586
      %v626 = vunpack.c.l.b16 %v587
      %v627 = vunpack.c.l.b16 %v588
      %v628 = vunpack.c.l.b16 %v589
      %v629 = vunpack.c.l.b16 %v590
      %v630 = vunpack.c.l.b16 %v591
      %v631 = vunpack.c.l.b16 %v592
      %v632 = vunpack.c.l.b16 %v593
      %v633 = vunpack.c.l.b16 %v594
      %v634 = vunpack.c.l.b16 %v595
      %v635 = vunpack.c.l.b16 %v596
      %v636 = vunpack.c.l.b16 %v597
      %v637 = vunpack.c.l.b16 %v598
      %v638 = vunpack.c.l.b16 %v599
      %v639 = vunpack.c.l.b16 %v600
      %v640 = vpack.c.b16 %v625, %v624
      %v641 = vpack.c.b16 %v627, %v626
      %v642 = vpack.c.b16 %v629, %v628
      %v643 = vpack.c.b16 %v631, %v630
      %v644 = vpack.c.b16 %v633, %v632
      %v645 = vpack.c.b16 %v635, %v634
      %v646 = vpack.c.b16 %v637, %v636
      %v647 = vpack.c.b16 %v639, %v638
      %656 = vmatprep.subr.bf16.mxu0 0
      %657 = vmatpush1.bf16.msra.mxu0 %v647
      %658 = vmatprep.subr.bf16.mxu0 0
      %659 = vmatpush1.bf16.msra.mxu0 %v646
      %660 = vmatprep.subr.bf16.mxu0 0
      %661 = vmatpush1.bf16.msra.mxu0 %v645
      %662 = vmatprep.subr.bf16.mxu0 0
      %663 = vmatpush1.bf16.msra.mxu0 %v644
      %664 = vmatprep.subr.bf16.mxu0 0
      %665 = vmatpush1.bf16.msra.mxu0 %v643
      %666 = vmatprep.subr.bf16.mxu0 0
      %667 = vmatpush1.bf16.msra.mxu0 %v642
      %668 = vmatprep.subr.bf16.mxu0 0
      %669 = vmatpush1.bf16.msra.mxu0 %v641
      %670 = vmatprep.subr.bf16.mxu0 0
      %671 = vmatpush1.bf16.msra.mxu0 %v640
      %672 = vmatprep.subr.bf16.mxu0 0
      %673 = vmatpush2.bf16.msra.mxu0 0
      %674 = vmatprep.subr.bf16.mxu0 0
      %675 = vmatpush2.bf16.msra.mxu0 0
      %676 = vmatprep.subr.bf16.mxu0 0
      %677 = vmatpush2.bf16.msra.mxu0 0
      %678 = vmatprep.subr.bf16.mxu0 0
      %679 = vmatpush2.bf16.msra.mxu0 0
      %680 = vmatprep.subr.bf16.mxu0 0
      %681 = vmatpush2.bf16.msra.mxu0 0
      %682 = vmatprep.subr.bf16.mxu0 0
      %683 = vmatpush2.bf16.msra.mxu0 0
      %684 = vmatprep.subr.bf16.mxu0 0
      %685 = vmatpush2.bf16.msra.mxu0 0
      %686 = vmatprep.subr.bf16.mxu0 0
      %687 = vmatpush2.bf16.msra.mxu0 0
      %688 = vmatprep.mubr.bf16.mxu0 0
      %689 = vmatmul.mubr.bf16.gmra.mxu0 %v577
      %v690 = vpop.f32.mrf.mxu0
      %v691 = vadd.f32 %v606, %v690
      %v692 = vpop.f32.mrf.mxu0
      %v693 = vpop.f32.mrf.mxu0
      %v694 = vadd.f32 %v606, %v693
      %v695 = vpop.f32.mrf.mxu0
      %696 = vmatprep.mubr.bf16.mxu0 0
      %697 = vmatmul.mubr.bf16.gmra.mxu0 %v578
      %v698 = vpop.f32.mrf.mxu0
      %v699 = vadd.f32 %v606, %v698
      %v700 = vpop.f32.mrf.mxu0
      %v701 = vpop.f32.mrf.mxu0
      %v702 = vadd.f32 %v606, %v701
      %v703 = vpop.f32.mrf.mxu0
      %704 = vmatprep.mubr.bf16.mxu0 0
      %705 = vmatmul.mubr.bf16.gmra.mxu0 %v579
      %v706 = vpop.f32.mrf.mxu0
      %v707 = vadd.f32 %v606, %v706
      %v708 = vpop.f32.mrf.mxu0
      %v709 = vpop.f32.mrf.mxu0
      %v710 = vadd.f32 %v606, %v709
      %v711 = vpop.f32.mrf.mxu0
      %712 = vmatprep.mubr.bf16.mxu0 0
      %713 = vmatmul.mubr.bf16.gmra.mxu0 %v580
      %v714 = vpop.f32.mrf.mxu0
      %v715 = vadd.f32 %v606, %v714
      %v716 = vpop.f32.mrf.mxu0
      %v717 = vpop.f32.mrf.mxu0
      %v718 = vadd.f32 %v606, %v717
      %v719 = vpop.f32.mrf.mxu0
      %720 = vmatprep.mubr.bf16.mxu0 0
      %721 = vmatmul.mubr.bf16.gmra.mxu0 %v581
      %v722 = vpop.f32.mrf.mxu0
      %v723 = vadd.f32 %v606, %v722
      %v724 = vpop.f32.mrf.mxu0
      %v725 = vpop.f32.mrf.mxu0
      %v726 = vadd.f32 %v606, %v725
      %v727 = vpop.f32.mrf.mxu0
      %728 = vmatprep.mubr.bf16.mxu0 0
      %729 = vmatmul.mubr.bf16.gmra.mxu0 %v582
      %v730 = vpop.f32.mrf.mxu0
      %v731 = vadd.f32 %v606, %v730
      %v732 = vpop.f32.mrf.mxu0
      %v733 = vpop.f32.mrf.mxu0
      %v734 = vadd.f32 %v606, %v733
      %v735 = vpop.f32.mrf.mxu0
      %736 = vmatprep.mubr.bf16.mxu0 0
      %737 = vmatmul.mubr.bf16.gmra.mxu0 %v583
      %v738 = vpop.f32.mrf.mxu0
      %v739 = vadd.f32 %v606, %v738
      %v740 = vpop.f32.mrf.mxu0
      %v741 = vpop.f32.mrf.mxu0
      %v742 = vadd.f32 %v606, %v741
      %v743 = vpop.f32.mrf.mxu0
      %744 = vmatprep.mubr.bf16.mxu0 0
      %745 = vmatmul.mubr.bf16.gmra.mxu0 %v584
      %v746 = vpop.f32.mrf.mxu0
      %v747 = vadd.f32 %v606, %v746
      %v748 = vpop.f32.mrf.mxu0
      %v749 = vpop.f32.mrf.mxu0
      %v750 = vadd.f32 %v606, %v749
      %v751 = vpop.f32.mrf.mxu0
      %752 = vdwg.mxu0
      %v753 = vlaneseq
      %v754 = vand.u32 %v753, 127
      %vm755 = vcmp.ge.s32.totalorder %v754, 16
      %vm756 = vcmp.lt.s32.totalorder %v754, 32
      %vm757 = vmand %vm755, %vm756
      %vm758 = vcmp.ge.s32.totalorder %v754, 32
      %vm759 = vcmp.lt.s32.totalorder %v754, 48
      %vm760 = vmand %vm758, %vm759
      %v761 = vmul.f32 %v691, 1.442695
      %v762 = vpow.pop %v761
      %v763 = vmul.f32 %v694, 1.442695
      %v764 = vpow.pop %v763
      %v765 = vmul.f32 %v699, 1.442695
      %v766 = vpow.pop %v765
      %v767 = vmul.f32 %v702, 1.442695
      %v768 = vpow.pop %v767
      %v769 = vmul.f32 %v707, 1.442695
      %v770 = vpow.pop %v769
      %v771 = vmul.f32 %v710, 1.442695
      %v772 = vpow.pop %v771
      %v773 = vmul.f32 %v715, 1.442695
      %v774 = vpow.pop %v773
      %v775 = vmul.f32 %v718, 1.442695
      %v776 = vpow.pop %v775
      %v777 = vmul.f32 %v723, 1.442695
      %v778 = vpow.pop %v777
      %v779 = vmul.f32 %v726, 1.442695
      %v780 = vpow.pop %v779
      %v781 = vmul.f32 %v731, 1.442695
      %v782 = vpow.pop %v781
      %v783 = vmul.f32 %v734, 1.442695
      %v784 = vpow.pop %v783
      %v785 = vmul.f32 %v739, 1.442695
      %v786 = vpow.pop %v785
      %v787 = vmul.f32 %v742, 1.442695
      %v788 = vpow.pop %v787
      %v789 = vmul.f32 %v747, 1.442695
      %v790 = vpow.pop %v789
      %v791 = vmul.f32 %v750, 1.442695
      %v792 = vpow.pop %v791
      %v793 = vadd.f32 %v762, 0.0001
      %v794 = vadd.f32 %v764, 0.0001
      %v795 = vadd.f32 %v766, 0.0001
      %v796 = vadd.f32 %v768, 0.0001
      %v797 = vadd.f32 %v770, 0.0001
      %v798 = vadd.f32 %v772, 0.0001
      %v799 = vadd.f32 %v774, 0.0001
      %v800 = vadd.f32 %v776, 0.0001
      %v801 = vadd.f32 %v778, 0.0001
      %v802 = vadd.f32 %v780, 0.0001
      %v803 = vadd.f32 %v782, 0.0001
      %v804 = vadd.f32 %v784, 0.0001
      %v805 = vadd.f32 %v786, 0.0001
      %v806 = vadd.f32 %v788, 0.0001
      %v807 = vadd.f32 %v790, 0.0001
      %v808 = vadd.f32 %v792, 0.0001
      %v809 = vrsqrt.pop %v793
      %v810 = vmul.f32 %v793, %v809
      %vm811 = vcmp.eq.f32.partialorder %v793, inf
      %v812 = vsel %vm811, %v793, %v810
      %vm813 = vcmp.eq.f32.partialorder %v793, 0.0
      %v814 = vand.u32 %v793, 2147483648
      %v815 = vsel %vm813, %v814, %v812
      %v816 = vrsqrt.pop %v794
      %v817 = vmul.f32 %v794, %v816
      %vm818 = vcmp.eq.f32.partialorder %v794, inf
      %v819 = vsel %vm818, %v794, %v817
      %vm820 = vcmp.eq.f32.partialorder %v794, 0.0
      %v821 = vand.u32 %v794, 2147483648
      %v822 = vsel %vm820, %v821, %v819
      %v823 = vrsqrt.pop %v795
      %v824 = vmul.f32 %v795, %v823
      %vm825 = vcmp.eq.f32.partialorder %v795, inf
      %v826 = vsel %vm825, %v795, %v824
      %vm827 = vcmp.eq.f32.partialorder %v795, 0.0
      %v828 = vand.u32 %v795, 2147483648
      %v829 = vsel %vm827, %v828, %v826
      %v830 = vrsqrt.pop %v796
      %v831 = vmul.f32 %v796, %v830
      %vm832 = vcmp.eq.f32.partialorder %v796, inf
      %v833 = vsel %vm832, %v796, %v831
      %vm834 = vcmp.eq.f32.partialorder %v796, 0.0
      %v835 = vand.u32 %v796, 2147483648
      %v836 = vsel %vm834, %v835, %v833
      %v837 = vrsqrt.pop %v797
      %v838 = vmul.f32 %v797, %v837
      %vm839 = vcmp.eq.f32.partialorder %v797, inf
      %v840 = vsel %vm839, %v797, %v838
      %vm841 = vcmp.eq.f32.partialorder %v797, 0.0
      %v842 = vand.u32 %v797, 2147483648
      %v843 = vsel %vm841, %v842, %v840
      %v844 = vrsqrt.pop %v798
      %v845 = vmul.f32 %v798, %v844
      %vm846 = vcmp.eq.f32.partialorder %v798, inf
      %v847 = vsel %vm846, %v798, %v845
      %vm848 = vcmp.eq.f32.partialorder %v798, 0.0
      %v849 = vand.u32 %v798, 2147483648
      %v850 = vsel %vm848, %v849, %v847
      %v851 = vrsqrt.pop %v799
      %v852 = vmul.f32 %v799, %v851
      %vm853 = vcmp.eq.f32.partialorder %v799, inf
      %v854 = vsel %vm853, %v799, %v852
      %vm855 = vcmp.eq.f32.partialorder %v799, 0.0
      %v856 = vand.u32 %v799, 2147483648
      %v857 = vsel %vm855, %v856, %v854
      %v858 = vrsqrt.pop %v800
      %v859 = vmul.f32 %v800, %v858
      %vm860 = vcmp.eq.f32.partialorder %v800, inf
      %v861 = vsel %vm860, %v800, %v859
      %vm862 = vcmp.eq.f32.partialorder %v800, 0.0
      %v863 = vand.u32 %v800, 2147483648
      %v864 = vsel %vm862, %v863, %v861
      %v865 = vrsqrt.pop %v801
      %v866 = vmul.f32 %v801, %v865
      %vm867 = vcmp.eq.f32.partialorder %v801, inf
      %v868 = vsel %vm867, %v801, %v866
      %vm869 = vcmp.eq.f32.partialorder %v801, 0.0
      %v870 = vand.u32 %v801, 2147483648
      %v871 = vsel %vm869, %v870, %v868
      %v872 = vrsqrt.pop %v802
      %v873 = vmul.f32 %v802, %v872
      %vm874 = vcmp.eq.f32.partialorder %v802, inf
      %v875 = vsel %vm874, %v802, %v873
      %vm876 = vcmp.eq.f32.partialorder %v802, 0.0
      %v877 = vand.u32 %v802, 2147483648
      %v878 = vsel %vm876, %v877, %v875
      %v879 = vrsqrt.pop %v803
      %v880 = vmul.f32 %v803, %v879
      %vm881 = vcmp.eq.f32.partialorder %v803, inf
      %v882 = vsel %vm881, %v803, %v880
      %vm883 = vcmp.eq.f32.partialorder %v803, 0.0
      %v884 = vand.u32 %v803, 2147483648
      %v885 = vsel %vm883, %v884, %v882
      %v886 = vrsqrt.pop %v804
      %v887 = vmul.f32 %v804, %v886
      %vm888 = vcmp.eq.f32.partialorder %v804, inf
      %v889 = vsel %vm888, %v804, %v887
      %vm890 = vcmp.eq.f32.partialorder %v804, 0.0
      %v891 = vand.u32 %v804, 2147483648
      %v892 = vsel %vm890, %v891, %v889
      %v893 = vrsqrt.pop %v805
      %v894 = vmul.f32 %v805, %v893
      %vm895 = vcmp.eq.f32.partialorder %v805, inf
      %v896 = vsel %vm895, %v805, %v894
      %vm897 = vcmp.eq.f32.partialorder %v805, 0.0
      %v898 = vand.u32 %v805, 2147483648
      %v899 = vsel %vm897, %v898, %v896
      %v900 = vrsqrt.pop %v806
      %v901 = vmul.f32 %v806, %v900
      %vm902 = vcmp.eq.f32.partialorder %v806, inf
      %v903 = vsel %vm902, %v806, %v901
      %vm904 = vcmp.eq.f32.partialorder %v806, 0.0
      %v905 = vand.u32 %v806, 2147483648
      %v906 = vsel %vm904, %v905, %v903
      %v907 = vrsqrt.pop %v807
      %v908 = vmul.f32 %v807, %v907
      %vm909 = vcmp.eq.f32.partialorder %v807, inf
      %v910 = vsel %vm909, %v807, %v908
      %vm911 = vcmp.eq.f32.partialorder %v807, 0.0
      %v912 = vand.u32 %v807, 2147483648
      %v913 = vsel %vm911, %v912, %v910
      %v914 = vrsqrt.pop %v808
      %v915 = vmul.f32 %v808, %v914
      %vm916 = vcmp.eq.f32.partialorder %v808, inf
      %v917 = vsel %vm916, %v808, %v915
      %vm918 = vcmp.eq.f32.partialorder %v808, 0.0
      %v919 = vand.u32 %v808, 2147483648
      %v920 = vsel %vm918, %v919, %v917
      %937 = vrot.lane.b32.xlu0 %v815, 16
      %v938 = vpop.permute.xlu0 %937
      %939 = vrot.lane.b32.xlu0 %v822, 16
      %v940 = vpop.permute.xlu0 %939
      %941 = vrot.lane.b32.xlu0 %v829, 16
      %v942 = vpop.permute.xlu0 %941
      %943 = vrot.lane.b32.xlu0 %v836, 16
      %v944 = vpop.permute.xlu0 %943
      %945 = vrot.lane.b32.xlu0 %v843, 16
      %v946 = vpop.permute.xlu0 %945
      %947 = vrot.lane.b32.xlu0 %v850, 16
      %v948 = vpop.permute.xlu0 %947
      %949 = vrot.lane.b32.xlu0 %v857, 16
      %v950 = vpop.permute.xlu0 %949
      %951 = vrot.lane.b32.xlu0 %v864, 16
      %v952 = vpop.permute.xlu0 %951
      %953 = vrot.lane.b32.xlu0 %v871, 16
      %v954 = vpop.permute.xlu0 %953
      %955 = vrot.lane.b32.xlu0 %v878, 16
      %v956 = vpop.permute.xlu0 %955
      %957 = vrot.lane.b32.xlu0 %v885, 16
      %v958 = vpop.permute.xlu0 %957
      %959 = vrot.lane.b32.xlu0 %v892, 16
      %v960 = vpop.permute.xlu0 %959
      %961 = vrot.lane.b32.xlu0 %v899, 16
      %v962 = vpop.permute.xlu0 %961
      %963 = vrot.lane.b32.xlu0 %v906, 16
      %v964 = vpop.permute.xlu0 %963
      %965 = vrot.lane.b32.xlu0 %v913, 16
      %v966 = vpop.permute.xlu0 %965
      %967 = vrot.lane.b32.xlu0 %v920, 16
      %v968 = vpop.permute.xlu0 %967
      %v985 = vsel %vm757, %v793, %v691
      %v986 = vsel %vm757, %v794, %v694
      %v987 = vsel %vm757, %v795, %v699
      %v988 = vsel %vm757, %v796, %v702
      %v989 = vsel %vm757, %v797, %v707
      %v990 = vsel %vm757, %v798, %v710
      %v991 = vsel %vm757, %v799, %v715
      %v992 = vsel %vm757, %v800, %v718
      %v993 = vsel %vm757, %v801, %v723
      %v994 = vsel %vm757, %v802, %v726
      %v995 = vsel %vm757, %v803, %v731
      %v996 = vsel %vm757, %v804, %v734
      %v997 = vsel %vm757, %v805, %v739
      %v998 = vsel %vm757, %v806, %v742
      %v999 = vsel %vm757, %v807, %v747
      %v1000 = vsel %vm757, %v808, %v750
      %v1001 = vld [vmem:[%s272] sm:$0xf]
      %v1002 = vld [vmem:[%s272 + $0x4] sm:$0xf]
      %v1003 = vld [vmem:[%s272 + $0x8] sm:$0xf]
      %v1004 = vld [vmem:[%s272 + $0xc] sm:$0xf]
      %v1005 = vld [vmem:[%s272 + $0x10] sm:$0xf]
      %v1006 = vld [vmem:[%s272 + $0x14] sm:$0xf]
      %v1007 = vld [vmem:[%s272 + $0x18] sm:$0xf]
      %v1008 = vld [vmem:[%s272 + $0x1c] sm:$0xf]
      %v1009 = vld [vmem:[%s272 + $0x20] sm:$0xf]
      %v1010 = vld [vmem:[%s272 + $0x24] sm:$0xf]
      %v1011 = vld [vmem:[%s272 + $0x28] sm:$0xf]
      %v1012 = vld [vmem:[%s272 + $0x2c] sm:$0xf]
      %v1013 = vld [vmem:[%s272 + $0x30] sm:$0xf]
      %v1014 = vld [vmem:[%s272 + $0x34] sm:$0xf]
      %v1015 = vld [vmem:[%s272 + $0x38] sm:$0xf]
      %v1016 = vld [vmem:[%s272 + $0x3c] sm:$0xf]
      %v1017 = vunpack.c.l.bf16 %v1001
      %v1018 = vunpack.c.l.bf16 %v1002
      %v1019 = vunpack.c.l.bf16 %v1003
      %v1020 = vunpack.c.l.bf16 %v1004
      %v1021 = vunpack.c.l.bf16 %v1005
      %v1022 = vunpack.c.l.bf16 %v1006
      %v1023 = vunpack.c.l.bf16 %v1007
      %v1024 = vunpack.c.l.bf16 %v1008
      %v1025 = vunpack.c.l.bf16 %v1009
      %v1026 = vunpack.c.l.bf16 %v1010
      %v1027 = vunpack.c.l.bf16 %v1011
      %v1028 = vunpack.c.l.bf16 %v1012
      %v1029 = vunpack.c.l.bf16 %v1013
      %v1030 = vunpack.c.l.bf16 %v1014
      %v1031 = vunpack.c.l.bf16 %v1015
      %v1032 = vunpack.c.l.bf16 %v1016
      %v1033 = vmul.f32 %v938, %v1017
      %v1034 = vmul.f32 %v940, %v1018
      %v1035 = vmul.f32 %v942, %v1019
      %v1036 = vmul.f32 %v944, %v1020
      %v1037 = vmul.f32 %v946, %v1021
      %v1038 = vmul.f32 %v948, %v1022
      %v1039 = vmul.f32 %v950, %v1023
      %v1040 = vmul.f32 %v952, %v1024
      %v1041 = vmul.f32 %v954, %v1025
      %v1042 = vmul.f32 %v956, %v1026
      %v1043 = vmul.f32 %v958, %v1027
      %v1044 = vmul.f32 %v960, %v1028
      %v1045 = vmul.f32 %v962, %v1029
      %v1046 = vmul.f32 %v964, %v1030
      %v1047 = vmul.f32 %v966, %v1031
      %v1048 = vmul.f32 %v968, %v1032
      %v1049 = vadd.f32 %v691, %v1033
      %v1050 = vadd.f32 %v694, %v1034
      %v1051 = vadd.f32 %v699, %v1035
      %v1052 = vadd.f32 %v702, %v1036
      %v1053 = vadd.f32 %v707, %v1037
      %v1054 = vadd.f32 %v710, %v1038
      %v1055 = vadd.f32 %v715, %v1039
      %v1056 = vadd.f32 %v718, %v1040
      %v1057 = vadd.f32 %v723, %v1041
      %v1058 = vadd.f32 %v726, %v1042
      %v1059 = vadd.f32 %v731, %v1043
      %v1060 = vadd.f32 %v734, %v1044
      %v1061 = vadd.f32 %v739, %v1045
      %v1062 = vadd.f32 %v742, %v1046
      %v1063 = vadd.f32 %v747, %v1047
      %v1064 = vadd.f32 %v750, %v1048
      %v1065 = vsel %vm760, %v1049, %v985
      %v1066 = vsel %vm760, %v1050, %v986
      %v1067 = vsel %vm760, %v1051, %v987
      %v1068 = vsel %vm760, %v1052, %v988
      %v1069 = vsel %vm760, %v1053, %v989
      %v1070 = vsel %vm760, %v1054, %v990
      %v1071 = vsel %vm760, %v1055, %v991
      %v1072 = vsel %vm760, %v1056, %v992
      %v1073 = vsel %vm760, %v1057, %v993
      %v1074 = vsel %vm760, %v1058, %v994
      %v1075 = vsel %vm760, %v1059, %v995
      %v1076 = vsel %vm760, %v1060, %v996
      %v1077 = vsel %vm760, %v1061, %v997
      %v1078 = vsel %vm760, %v1062, %v998
      %v1079 = vsel %vm760, %v1063, %v999
      %v1080 = vsel %vm760, %v1064, %v1000
      %1081 = vst [vmem:[%s278] sm:$0xff] %v1065
      %1082 = vst [vmem:[%s278 + $0x8] sm:$0xff] %v1066
      %1083 = vst [vmem:[%s278 + $0x10] sm:$0xff] %v1067
      %1084 = vst [vmem:[%s278 + $0x18] sm:$0xff] %v1068
      %1085 = vst [vmem:[%s278 + $0x20] sm:$0xff] %v1069
      %1086 = vst [vmem:[%s278 + $0x28] sm:$0xff] %v1070
      %1087 = vst [vmem:[%s278 + $0x30] sm:$0xff] %v1071
      %1088 = vst [vmem:[%s278 + $0x38] sm:$0xff] %v1072
      %1089 = vst [vmem:[%s278 + $0x40] sm:$0xff] %v1073
      %1090 = vst [vmem:[%s278 + $0x48] sm:$0xff] %v1074
      %1091 = vst [vmem:[%s278 + $0x50] sm:$0xff] %v1075
      %1092 = vst [vmem:[%s278 + $0x58] sm:$0xff] %v1076
      %1093 = vst [vmem:[%s278 + $0x60] sm:$0xff] %v1077
      %1094 = vst [vmem:[%s278 + $0x68] sm:$0xff] %v1078
      %1095 = vst [vmem:[%s278 + $0x70] sm:$0xff] %v1079
      %1096 = vst [vmem:[%s278 + $0x78] sm:$0xff] %v1080
      %s1097 = smul.u32 16, %s17
      %p1098 = scmp.lt.s32.totalorder %s1097, 31
      %s1099 = scalar_select %p1098, %s1097, 31
      %s1100 = smul.addr %s1099, 8
      %s1101 = scalar_lea.vmem %s6, %s1100
      // Predicated region
      $region45: #{encoder_forward.1} parent=43 // pred_check
        %p1102 = pneg %p171
      $region46: #{encoder_forward.1} parent=43 // pred_check_branch
        %1104 = sbr.rel (%p1102) target = $region48
      $region47: #{encoder_forward.1} parent=43 // pred_region
        %s1105 = smul.u32 16, %s17
      $region48: #{encoder_forward.1} parent=43 // pred_fallthru
        _
    $region44: #{encoder_forward.1} parent=5 // pred_fallthru
      _
    %p1106 = scmp.le.s32.totalorder 2, %s12
    // Predicated region
    $region49: #{encoder_forward.1} parent=5 // pred_check
      %p1107 = pneg %p1106
    $region50: #{encoder_forward.1} parent=5 // pred_check_branch
      %1109 = sbr.rel (%p1107) target = $region52
    $region51: #{encoder_forward.1} parent=5 // pred_region
      %s1110 = ssub.s32 %s12, 2
      // Predicated region
      $region53: #{encoder_forward.1} parent=51 // pred_check
        %p1111 = pneg %p177
      $region54: #{encoder_forward.1} parent=51 // pred_check_branch
        %1113 = sbr.rel (%p1111) target = $region56
      $region55: #{encoder_forward.1} parent=51 // pred_region
        %s1114 = smul.u32 16, %s18
        %p1115 = scmp.lt.s32.totalorder %s1114, 31
        %s1116 = scalar_select %p1115, %s1114, 31
        %s1117 = smul.addr %s1116, 8
        %s1118 = scalar_lea.vmem %s6, %s1117
      $region56: #{encoder_forward.1} parent=51 // pred_fallthru
        _
    $region52: #{encoder_forward.1} parent=5 // pred_fallthru
      _
  $region6: #{encoder_forward.1} parent=0 // loop_footer
    %s16 = sadd.s32 1, %s12
  $region7: #{encoder_forward.1} parent=0 // loop_footer_branch
    %11 = sbr.rel target = $region3
  $region8: #{encoder_forward.1} parent=0 // loop_exit
    _

</llo_original>
